<compile_context>
chip_gen: v7x
topology: tpu7x:2x2x1
jax: 0.10.0
libtpu: 0.0.40
codegen_flags: <defaults>
</compile_context>

<pallas_src>
import functools
import math

import numpy as np
import jax
import jax.numpy as jnp
from jax import lax
from jax.experimental import pallas as pl
from jax.experimental.pallas import tpu as pltpu

# ulp-level difference vs the EUP's in-kernel log(0.5) is far inside tolerance.
_LN2 = math.log(2.0)


def _default_tile_rows():
    # (tile_rows, 128) f32 x 2 inputs x 2 pipeline buffers must stay under the
    # default scoped-VMEM limit (16 MiB v5e / 32 MiB v6e / 32-of-64 MiB v7x).
    # >=512 rows already sits near the HBM roofline; bigger tiles only
    # amortize the ~0.35us per-grid-step overhead.
    try:
        kind = jax.devices()[0].device_kind.lower()
    except Exception:
        return 1024
    if "v6" in kind:
        return 4096          # v6e: 128 MiB physical VMEM, plenty of headroom
    if "v5 lite" in kind or "v5e" in kind or "v5litepod" in kind:
        return 1024          # v5e: smallest default scoped VMEM (16 MiB)
    return 2048              # v7x / others: 64 MiB physical VMEM


def _loss_kernel(real_ref, fake_ref, small_ref, wt_ref, out_ref, acc_ref, *,
                 total_rows, pad_elems, n_rec, n_lat, b8,
                 kl_beta, triplet_beta, margin):
    k = pl.program_id(0)
    nk = pl.num_programs(0)
    tile_rows = real_ref.shape[0]          # static block shape

    @pl.when(k == 0)
    def _init():
        acc_ref[...] = jnp.zeros_like(acc_ref)
        out_ref[...] = jnp.zeros_like(out_ref)

    # ---- reconstruction partial sum (hot loop, no per-element mask) ----
    real = real_ref[...].astype(jnp.float32)
    fake = fake_ref[...].astype(jnp.float32)
    # torch.nn.functional.binary_cross_entropy clamps its log outputs at -100.
    log_f = jnp.maximum(jnp.log(fake), -100.0)
    log_1mf = jnp.maximum(jnp.log(1.0 - fake), -100.0)
    bce = -(real * log_f + (1.0 - real) * log_1mf)

    def _acc(x):
        # Sublane-group reduction (TILE_R,128)->(TILE_R//8,8,128)->(8,128):
        # pure vreg-wise VPU adds.  The one cross-lane reduce is in finalize.
        acc_ref[...] += jnp.sum(x.reshape(-1, 8, 128), axis=0)

    ragged = (total_rows % tile_rows) != 0       # trace-time Python bool
    if ragged:
        tail_rows = total_rows % tile_rows       # valid rows in last block

        @pl.when(k != nk - 1)
        def _acc_body():
            _acc(bce)

        @pl.when(k == nk - 1)
        def _acc_tail():
            # Rows past the slab hold unspecified data; mask only this block.
            row = lax.broadcasted_iota(jnp.int32, bce.shape, 0)
            _acc(jnp.where(row < tail_rows, bce, 0.0))
    else:
        _acc(bce)

    # ---- finalize: recon + KL + triplet + combine (runs once) ----
    @pl.when(k == nk - 1)
    def _finalize():
        recon_sum = jnp.sum(acc_ref[...])
        # Each 0.5-valued padded element contributed exactly ln(2).
        recon = (recon_sum - pad_elems * _LN2) / float(n_rec)

        small = small_ref[...]
        mu = small[0:b8, :]
        lv = small[b8:2 * b8, :]
        # Zero-padded entries contribute exactly 0 to the KL sum.
        kl = -0.5 * jnp.sum(1.0 + lv - mu * mu - jnp.exp(lv)) / float(n_lat)

        if triplet_beta == 0.0:
            # Matches the module: triplet term is skipped entirely.
            triplet = jnp.float32(0.0)
        else:
            t0 = 2 * b8
            T8 = small[t0:t0 + 8, :]      # rows: anchor, pos, neg, bias, 0...
            m = jnp.dot(T8, wt_ref[...],
                        preferred_element_type=jnp.float32)   # T8 @ W^T
            bias = T8[3:4, :]
            diff_ap = T8[0:1, :] - T8[1:2, :]
            diff_an = T8[0:1, :] - T8[2:3, :]
            dist_ap = jnp.sum(diff_ap * (m[0:1, :] - m[1:2, :] + bias))
            dist_an = jnp.sum(diff_an * (m[0:1, :] - m[2:3, :] + bias))
            triplet = jnp.maximum(dist_ap - dist_an + margin, 0.0)

        final = recon + kl_beta * kl + triplet_beta * triplet

        out_ref[0:1, :] = jnp.full((1, 128), final, jnp.float32)
        out_ref[1:2, :] = jnp.full((1, 128), triplet, jnp.float32)
        out_ref[2:3, :] = jnp.full((1, 128), recon, jnp.float32)
        out_ref[3:4, :] = jnp.full((1, 128), kl, jnp.float32)


def vae_metric_triplet_loss(real_data, fake_data, mean, logvar, triplet_data,
                            W, bias, *, kl_beta=1.0, triplet_beta=1.0,
                            triplet_margin=1.0, tile_rows=None):
    """Returns (final_loss, triplet_error, recon_error, kl_divergence_error)."""
    anchor, positive, negative = triplet_data
    a0 = anchor[0].astype(jnp.float32)
    p0 = positive[0].astype(jnp.float32)
    n0 = negative[0].astype(jnp.float32)
    D = int(W.shape[0])
    if D > 128:
        raise ValueError("latent_dim > 128 not supported by this kernel")

    # ---- image slabs: flatten (free) and pad only when strictly needed ----
    rf = real_data.reshape(-1)
    ff = fake_data.reshape(-1)
    n_rec = int(rf.shape[0])
    pad_elems = (-n_rec) % (8 * 128)
    if pad_elems:
        # Rare for image batches (element counts are usually 1024-aligned);
        # padding value 0.5 adds exactly ln(2)/element, subtracted in-kernel.
        rf = jnp.pad(rf, (0, pad_elems), constant_values=0.5)
        ff = jnp.pad(ff, (0, pad_elems), constant_values=0.5)
    total_rows = (n_rec + pad_elems) // 128
    rf2 = rf.reshape(total_rows, 128)
    ff2 = ff.reshape(total_rows, 128)

    if tile_rows is None:
        tile_rows = _default_tile_rows()
    tile_rows = max(8, (int(tile_rows) // 8) * 8)
    tile_rows = min(tile_rows, total_rows)
    grid = pl.cdiv(total_rows, tile_rows)

    # ---- pack the tiny operands into one (2*b8 + 8, 128) slab ----
    B = int(mean.shape[0])
    n_lat = int(mean.shape[0]) * int(mean.shape[1])
    b8 = -(-B // 8) * 8

    def _pad_tile(x, rows):
        x = x.astype(jnp.float32)
        return jnp.pad(x, ((0, rows - x.shape[0]), (0, 128 - x.shape[1])))

    trip = jnp.zeros((8, 128), jnp.float32)
    trip = (trip.at[0, :D].set(a0)
                .at[1, :D].set(p0)
                .at[2, :D].set(n0)
                .at[3, :D].set(bias.astype(jnp.float32)))
    small = jnp.concatenate(
        [_pad_tile(mean, b8), _pad_tile(logvar, b8), trip], axis=0)

    wt = jnp.zeros((128, 128), jnp.float32).at[:D, :D].set(
        W.T.astype(jnp.float32))

    kernel = functools.partial(
        _loss_kernel, total_rows=total_rows, pad_elems=pad_elems,
        n_rec=n_rec, n_lat=n_lat, b8=b8, kl_beta=float(kl_beta),
        triplet_beta=float(triplet_beta), margin=float(triplet_margin))

    small_rows = int(small.shape[0])
    out = pl.pallas_call(
        kernel,
        out_shape=jax.ShapeDtypeStruct((8, 128), jnp.float32),
        grid_spec=pltpu.PrefetchScalarGridSpec(
            num_scalar_prefetch=0,
            grid=(grid,),
            in_specs=[
                pl.BlockSpec((tile_rows, 128), lambda k: (k, 0)),
                pl.BlockSpec((tile_rows, 128), lambda k: (k, 0)),
                pl.BlockSpec((small_rows, 128), lambda k: (0, 0)),
                pl.BlockSpec((128, 128), lambda k: (0, 0)),
            ],
            out_specs=pl.BlockSpec((8, 128), lambda k: (0, 0)),
            scratch_shapes=[pltpu.VMEM((8, 128), jnp.float32)],
        ),
        compiler_params=pltpu.CompilerParams(
            dimension_semantics=("arbitrary",)),
    )(rf2, ff2, small, wt)

    return out[0, 0], out[1, 0], out[2, 0], out[3, 0]


def _reference(real_data, fake_data, mean, logvar, triplet_data, W, bias,
               kl_beta=1.0, triplet_beta=1.0, triplet_margin=1.0):
    anchor, positive, negative = triplet_data
    a0, p0, n0 = anchor[0], positive[0], negative[0]

    def maha(a, b):
        d = a - b
        return jnp.sum(d * (d @ W.T + bias))

    trip = jnp.maximum(maha(a0, p0) - maha(a0, n0) + triplet_margin, 0.0)
    log_f = jnp.maximum(jnp.log(fake_data), -100.0)
    log_1mf = jnp.maximum(jnp.log(1.0 - fake_data), -100.0)
    recon = jnp.mean(-(real_data * log_f + (1.0 - real_data) * log_1mf))
    kl = -0.5 * jnp.mean(1.0 + logvar - mean ** 2 - jnp.exp(logvar))
    final = recon + kl_beta * kl + triplet_beta * trip
    return final, trip, recon, kl


if __name__ == "__main__":
    key = jax.random.PRNGKey(0)
    k1, k2, k3, k4, k5, k6, k7, k8, k9 = jax.random.split(key, 9)

    latent_dim = 2
    B, C, H, Wd = 2, 4, 16, 16

    # Inputs (BCE requires fake in (0,1), real in [0,1]).
    real_data = jax.random.uniform(k1, (B, C, H, Wd), jnp.float32,
                                   minval=0.05, maxval=0.95)
    fake_data = jax.nn.sigmoid(jax.random.normal(k2, (B, C, H, Wd), jnp.float32))
    mean = jax.random.normal(k3, (B, latent_dim), jnp.float32)
    logvar = 0.1 * jax.random.normal(k4, (B, latent_dim), jnp.float32)
    anchor = jax.random.normal(k5, (B, latent_dim), jnp.float32)
    positive = jax.random.normal(k6, (B, latent_dim), jnp.float32)
    negative = jax.random.normal(k7, (B, latent_dim), jnp.float32)
    triplet_data = (anchor, positive, negative)

    # Deterministic parameters: PSD metric weight (geotorch constraint) + bias.
    A = jax.random.normal(k8, (latent_dim, latent_dim), jnp.float32)
    W = A @ A.T + 0.1 * jnp.eye(latent_dim, dtype=jnp.float32)
    bias = 0.01 * jax.random.normal(k9, (latent_dim,), jnp.float32)

    # Small tile_rows forces a multi-step grid so the accumulator /
    # pl.when(init/finalize) pipeline path is exercised even at toy sizes.
    outs = vae_metric_triplet_loss(real_data, fake_data, mean, logvar,
                                   triplet_data, W, bias,
                                   kl_beta=1.0, triplet_beta=1.0,
                                   triplet_margin=1.0, tile_rows=8)
    outs = jax.block_until_ready(outs)

    refs = _reference(real_data, fake_data, mean, logvar, triplet_data, W, bias)
    for o, r in zip(outs, refs):
        np.testing.assert_allclose(np.asarray(o), np.asarray(r),
                                   rtol=1e-4, atol=1e-4)

    print("KERNEL_OK")
</pallas_src>

<mosaic_0001>
module attributes {stable_mosaic.version = 11 : i64} {
  func.func @_loss_kernel(%arg0: i32, %arg1: memref<8x128xf32, #tpu.memory_space<vmem>>, %arg2: memref<8x128xf32, #tpu.memory_space<vmem>>, %arg3: memref<24x128xf32, #tpu.memory_space<vmem>>, %arg4: memref<128x128xf32, #tpu.memory_space<vmem>>, %arg5: memref<8x128xf32, #tpu.memory_space<vmem>>, %arg6: memref<8x128xf32, #tpu.memory_space<vmem>>) attributes {dimension_semantics = [#tpu.dimension_semantics<arbitrary>], iteration_bounds = array<i64: 2>, scalar_prefetch = 0 : i64, scratch_operands = 1 : i64, tpu.core_type = #tpu.core_type<tc>, window_params = [{transform_indices = @transform_0, window_bounds = array<i64: 8, 128>}, {transform_indices = @transform_1, window_bounds = array<i64: 8, 128>}, {pipeline_mode = #tpu.pipeline_mode<synchronous>, transform_indices = @transform_2, window_bounds = array<i64: 24, 128>}, {pipeline_mode = #tpu.pipeline_mode<synchronous>, transform_indices = @transform_3, window_bounds = array<i64: 128, 128>}, {pipeline_mode = #tpu.pipeline_mode<synchronous>, transform_indices = @transform_4, window_bounds = array<i64: 8, 128>}]} {
    %c0_i32 = arith.constant 0 : i32
    %0 = arith.cmpi eq, %arg0, %c0_i32 : i32
    %1 = arith.extui %0 : i1 to i32
    %c0_i32_0 = arith.constant 0 : i32
    %2 = arith.cmpi ne, %1, %c0_i32_0 : i32
    scf.if %2 {
      %cst_14 = arith.constant 0.000000e+00 : f32
      %28 = vector.broadcast %cst_14 : f32 to vector<8x128xf32>
      %c0_15 = arith.constant 0 : index
      %c0_16 = arith.constant 0 : index
      %29 = vector.load %arg6[%c0_15, %c0_16] : memref<8x128xf32, #tpu.memory_space<vmem>>, vector<8x128xf32>
      tpu.vector_store %arg6[%c0_15, %c0_16], %28 {strides = array<i32>} : memref<8x128xf32, #tpu.memory_space<vmem>>, vector<8x128xf32>,
      %cst_17 = arith.constant 0.000000e+00 : f32
      %30 = vector.broadcast %cst_17 : f32 to vector<8x128xf32>
      %c0_18 = arith.constant 0 : index
      %c0_19 = arith.constant 0 : index
      %31 = vector.load %arg5[%c0_18, %c0_19] : memref<8x128xf32, #tpu.memory_space<vmem>>, vector<8x128xf32>
      tpu.vector_store %arg5[%c0_18, %c0_19], %30 {strides = array<i32>} : memref<8x128xf32, #tpu.memory_space<vmem>>, vector<8x128xf32>,
    } else {
    }
    %c0 = arith.constant 0 : index
    %c0_1 = arith.constant 0 : index
    %3 = vector.load %arg1[%c0, %c0_1] : memref<8x128xf32, #tpu.memory_space<vmem>>, vector<8x128xf32>
    %c0_2 = arith.constant 0 : index
    %c0_3 = arith.constant 0 : index
    %4 = vector.load %arg2[%c0_2, %c0_3] : memref<8x128xf32, #tpu.memory_space<vmem>>, vector<8x128xf32>
    %5 = math.log %4 : vector<8x128xf32>
    %cst = arith.constant -1.000000e+02 : f32
    %6 = vector.broadcast %cst : f32 to vector<8x128xf32>
    %7 = arith.maximumf %5, %6 : vector<8x128xf32>
    %cst_4 = arith.constant 1.000000e+00 : f32
    %8 = vector.broadcast %cst_4 : f32 to vector<8x128xf32>
    %9 = arith.subf %8, %4 : vector<8x128xf32>
    %10 = math.log %9 : vector<8x128xf32>
    %cst_5 = arith.constant -1.000000e+02 : f32
    %11 = vector.broadcast %cst_5 : f32 to vector<8x128xf32>
    %12 = arith.maximumf %10, %11 : vector<8x128xf32>
    %13 = arith.mulf %3, %7 : vector<8x128xf32>
    %cst_6 = arith.constant 1.000000e+00 : f32
    %14 = vector.broadcast %cst_6 : f32 to vector<8x128xf32>
    %15 = arith.subf %14, %3 : vector<8x128xf32>
    %16 = arith.mulf %15, %12 : vector<8x128xf32>
    %17 = arith.addf %13, %16 : vector<8x128xf32>
    %cst_7 = arith.constant 0.000000e+00 : f32
    %18 = vector.broadcast %cst_7 : f32 to vector<8x128xf32>
    %19 = arith.subf %18, %17 : vector<8x128xf32>
    %c0_8 = arith.constant 0 : index
    %c0_9 = arith.constant 0 : index
    %20 = vector.load %arg6[%c0_8, %c0_9] : memref<8x128xf32, #tpu.memory_space<vmem>>, vector<8x128xf32>
    %21 = vector.shape_cast %19 : vector<8x128xf32> to vector<1x8x128xf32>
    %cst_10 = arith.constant dense<0.000000e+00> : vector<8x128xf32>
    %22 = vector.multi_reduction <add>, %21, %cst_10 [0] : vector<1x8x128xf32> to vector<8x128xf32>
    %23 = arith.addf %20, %22 : vector<8x128xf32>
    %c0_11 = arith.constant 0 : index
    %c0_12 = arith.constant 0 : index
    %24 = vector.load %arg6[%c0_11, %c0_12] : memref<8x128xf32, #tpu.memory_space<vmem>>, vector<8x128xf32>
    tpu.vector_store %arg6[%c0_11, %c0_12], %23 {strides = array<i32>} : memref<8x128xf32, #tpu.memory_space<vmem>>, vector<8x128xf32>,
    %c1_i32 = arith.constant 1 : i32
    %25 = arith.cmpi eq, %arg0, %c1_i32 : i32
    %26 = arith.extui %25 : i1 to i32
    %c0_i32_13 = arith.constant 0 : i32
    %27 = arith.cmpi ne, %26, %c0_i32_13 : i32
    scf.if %27 {
      %c0_14 = arith.constant 0 : index
      %c0_15 = arith.constant 0 : index
      %28 = vector.load %arg6[%c0_14, %c0_15] : memref<8x128xf32, #tpu.memory_space<vmem>>, vector<8x128xf32>
      %29 = vector.shape_cast %28 : vector<8x128xf32> to vector<1x8x128xf32>
      %cst_16 = arith.constant dense<0.000000e+00> : vector<1xf32>
      %30 = vector.multi_reduction <add>, %29, %cst_16 [1, 2] : vector<1x8x128xf32> to vector<1xf32>
      %31 = vector.shape_cast %30 : vector<1xf32> to vector<1x1x1xf32>
      %32 = vector.extract %31[0, 0, 0] : f32 from vector<1x1x1xf32>
      %cst_17 = arith.constant 0.000000e+00 : f32
      %33 = arith.subf %32, %cst_17 : f32
      %cst_18 = arith.constant 2.048000e+03 : f32
      %34 = arith.divf %33, %cst_18 : f32
      %c0_19 = arith.constant 0 : index
      %c0_20 = arith.constant 0 : index
      %35 = vector.load %arg3[%c0_19, %c0_20] : memref<24x128xf32, #tpu.memory_space<vmem>>, vector<24x128xf32>
      %36 = vector.extract_strided_slice %35 {offsets = [0, 0], sizes = [8, 128], strides = [1, 1]} : vector<24x128xf32> to vector<8x128xf32>
      %37 = vector.extract_strided_slice %35 {offsets = [8, 0], sizes = [8, 128], strides = [1, 1]} : vector<24x128xf32> to vector<8x128xf32>
      %cst_21 = arith.constant 1.000000e+00 : f32
      %38 = vector.broadcast %cst_21 : f32 to vector<8x128xf32>
      %39 = arith.addf %38, %37 : vector<8x128xf32>
      %40 = arith.mulf %36, %36 : vector<8x128xf32>
      %41 = arith.subf %39, %40 : vector<8x128xf32>
      %42 = math.exp %37 : vector<8x128xf32>
      %43 = arith.subf %41, %42 : vector<8x128xf32>
      %44 = vector.shape_cast %43 : vector<8x128xf32> to vector<1x8x128xf32>
      %cst_22 = arith.constant dense<0.000000e+00> : vector<1xf32>
      %45 = vector.multi_reduction <add>, %44, %cst_22 [1, 2] : vector<1x8x128xf32> to vector<1xf32>
      %46 = vector.shape_cast %45 : vector<1xf32> to vector<1x1x1xf32>
      %47 = vector.extract %46[0, 0, 0] : f32 from vector<1x1x1xf32>
      %cst_23 = arith.constant -5.000000e-01 : f32
      %48 = arith.mulf %cst_23, %47 : f32
      %cst_24 = arith.constant 4.000000e+00 : f32
      %49 = arith.divf %48, %cst_24 : f32
      %50 = vector.extract_strided_slice %35 {offsets = [16, 0], sizes = [8, 128], strides = [1, 1]} : vector<24x128xf32> to vector<8x128xf32>
      %c0_25 = arith.constant 0 : index
      %c0_26 = arith.constant 0 : index
      %51 = vector.load %arg4[%c0_25, %c0_26] : memref<128x128xf32, #tpu.memory_space<vmem>>, vector<128x128xf32>
      %cst_27 = arith.constant dense<0.000000e+00> : vector<8x128xf32>
      %52 = tpu.matmul %50, %51, %cst_27 {dimension_numbers = #tpu.dot_dimension_numbers<[1], [0], [0], [1], [0, 0, 1, 1], [], []>} : vector<8x128xf32>, vector<128x128xf32>, vector<8x128xf32> -> vector<8x128xf32>
      %53 = vector.extract_strided_slice %50 {offsets = [3, 0], sizes = [1, 128], strides = [1, 1]} : vector<8x128xf32> to vector<1x128xf32>
      %54 = vector.extract_strided_slice %50 {offsets = [0, 0], sizes = [1, 128], strides = [1, 1]} : vector<8x128xf32> to vector<1x128xf32>
      %55 = vector.extract_strided_slice %50 {offsets = [1, 0], sizes = [1, 128], strides = [1, 1]} : vector<8x128xf32> to vector<1x128xf32>
      %56 = arith.subf %54, %55 : vector<1x128xf32>
      %57 = vector.extract_strided_slice %50 {offsets = [0, 0], sizes = [1, 128], strides = [1, 1]} : vector<8x128xf32> to vector<1x128xf32>
      %58 = vector.extract_strided_slice %50 {offsets = [2, 0], sizes = [1, 128], strides = [1, 1]} : vector<8x128xf32> to vector<1x128xf32>
      %59 = arith.subf %57, %58 : vector<1x128xf32>
      %60 = vector.extract_strided_slice %52 {offsets = [0, 0], sizes = [1, 128], strides = [1, 1]} : vector<8x128xf32> to vector<1x128xf32>
      %61 = vector.extract_strided_slice %52 {offsets = [1, 0], sizes = [1, 128], strides = [1, 1]} : vector<8x128xf32> to vector<1x128xf32>
      %62 = arith.subf %60, %61 : vector<1x128xf32>
      %63 = arith.addf %62, %53 : vector<1x128xf32>
      %64 = arith.mulf %56, %63 : vector<1x128xf32>
      %65 = vector.shape_cast %64 : vector<1x128xf32> to vector<1x1x128xf32>
      %cst_28 = arith.constant dense<0.000000e+00> : vector<1xf32>
      %66 = vector.multi_reduction <add>, %65, %cst_28 [1, 2] : vector<1x1x128xf32> to vector<1xf32>
      %67 = vector.shape_cast %66 : vector<1xf32> to vector<1x1x1xf32>
      %68 = vector.extract %67[0, 0, 0] : f32 from vector<1x1x1xf32>
      %69 = vector.extract_strided_slice %52 {offsets = [0, 0], sizes = [1, 128], strides = [1, 1]} : vector<8x128xf32> to vector<1x128xf32>
      %70 = vector.extract_strided_slice %52 {offsets = [2, 0], sizes = [1, 128], strides = [1, 1]} : vector<8x128xf32> to vector<1x128xf32>
      %71 = arith.subf %69, %70 : vector<1x128xf32>
      %72 = arith.addf %71, %53 : vector<1x128xf32>
      %73 = arith.mulf %59, %72 : vector<1x128xf32>
      %74 = vector.shape_cast %73 : vector<1x128xf32> to vector<1x1x128xf32>
      %cst_29 = arith.constant dense<0.000000e+00> : vector<1xf32>
      %75 = vector.multi_reduction <add>, %74, %cst_29 [1, 2] : vector<1x1x128xf32> to vector<1xf32>
      %76 = vector.shape_cast %75 : vector<1xf32> to vector<1x1x1xf32>
      %77 = vector.extract %76[0, 0, 0] : f32 from vector<1x1x1xf32>
      %78 = arith.subf %68, %77 : f32
      %cst_30 = arith.constant 1.000000e+00 : f32
      %79 = arith.addf %78, %cst_30 : f32
      %cst_31 = arith.constant 0.000000e+00 : f32
      %80 = arith.maximumf %79, %cst_31 : f32
      %cst_32 = arith.constant 1.000000e+00 : f32
      %81 = arith.mulf %cst_32, %49 : f32
      %82 = arith.addf %34, %81 : f32
      %cst_33 = arith.constant 1.000000e+00 : f32
      %83 = arith.mulf %cst_33, %80 : f32
      %84 = arith.addf %82, %83 : f32
      %85 = vector.broadcast %84 : f32 to vector<1x128xf32>
      %c0_34 = arith.constant 0 : index
      %c0_35 = arith.constant 0 : index
      %86 = vector.load %arg5[%c0_34, %c0_35] : memref<8x128xf32, #tpu.memory_space<vmem>>, vector<1x128xf32>
      tpu.vector_store %arg5[%c0_34, %c0_35], %85 {strides = array<i32>} : memref<8x128xf32, #tpu.memory_space<vmem>>, vector<1x128xf32>,
      %87 = vector.broadcast %80 : f32 to vector<1x128xf32>
      %c1 = arith.constant 1 : index
      %c0_36 = arith.constant 0 : index
      %88 = vector.load %arg5[%c1, %c0_36] : memref<8x128xf32, #tpu.memory_space<vmem>>, vector<1x128xf32>
      tpu.vector_store %arg5[%c1, %c0_36], %87 {strides = array<i32>} : memref<8x128xf32, #tpu.memory_space<vmem>>, vector<1x128xf32>,
      %89 = vector.broadcast %34 : f32 to vector<1x128xf32>
      %c2 = arith.constant 2 : index
      %c0_37 = arith.constant 0 : index
      %90 = vector.load %arg5[%c2, %c0_37] : memref<8x128xf32, #tpu.memory_space<vmem>>, vector<1x128xf32>
      tpu.vector_store %arg5[%c2, %c0_37], %89 {strides = array<i32>} : memref<8x128xf32, #tpu.memory_space<vmem>>, vector<1x128xf32>,
      %91 = vector.broadcast %49 : f32 to vector<1x128xf32>
      %c3 = arith.constant 3 : index
      %c0_38 = arith.constant 0 : index
      %92 = vector.load %arg5[%c3, %c0_38] : memref<8x128xf32, #tpu.memory_space<vmem>>, vector<1x128xf32>
      tpu.vector_store %arg5[%c3, %c0_38], %91 {strides = array<i32>} : memref<8x128xf32, #tpu.memory_space<vmem>>, vector<1x128xf32>,
    } else {
    }
    return
  }
  func.func @transform_0(%arg0: i32) -> (i32, i32) {
    %c0_i32 = arith.constant 0 : i32
    %c0_i32_0 = arith.constant 0 : i32
    return %arg0, %c0_i32 : i32, i32
  }
  func.func @transform_1(%arg0: i32) -> (i32, i32) {
    %c0_i32 = arith.constant 0 : i32
    %c0_i32_0 = arith.constant 0 : i32
    return %arg0, %c0_i32 : i32, i32
  }
  func.func @transform_2(%arg0: i32) -> (i32, i32) {
    %c0_i32 = arith.constant 0 : i32
    %c0_i32_0 = arith.constant 0 : i32
    %c0_i32_1 = arith.constant 0 : i32
    return %c0_i32, %c0_i32_0 : i32, i32
  }
  func.func @transform_3(%arg0: i32) -> (i32, i32) {
    %c0_i32 = arith.constant 0 : i32
    %c0_i32_0 = arith.constant 0 : i32
    %c0_i32_1 = arith.constant 0 : i32
    return %c0_i32, %c0_i32_0 : i32, i32
  }
  func.func @transform_4(%arg0: i32) -> (i32, i32) {
    %c0_i32 = arith.constant 0 : i32
    %c0_i32_0 = arith.constant 0 : i32
    %c0_i32_1 = arith.constant 0 : i32
    return %c0_i32, %c0_i32_0 : i32, i32
  }
}

</mosaic_0001>

<llo_original>
// kernel: tpu_custom_call.1
$region0: #{tpu_custom_call.1}
  #allocation0 [shape = 'u32[]', space=smem, size = 0x4, offset = 0x4, fixed_abs, tag = 'smem constant byte address 0x4 - core index']
  #allocation1 [shape = 'u32[144,128]{1,0:T(1,128)}', space=vmem, size = 0x12000, scoped, tag = 'internal scratch']
  #allocation2 [shape = 'f32[8,128]{1,0:T(8,128)}', space=vmem, size = 0x1000, scoped, tag = 'scratch operand']
  %s0 = inlined_call_operand.hbm [shape: f32[16,128], index: 0, kind: input, shape index: {}]
  %s1 = inlined_call_operand.hbm [shape: f32[16,128], index: 1, kind: input, shape index: {}]
  %s2 = inlined_call_operand.hbm [shape: f32[24,128], index: 2, kind: input, shape index: {}]
  %s3 = inlined_call_operand.hbm [shape: f32[128,128], index: 3, kind: input, shape index: {}]
  %s4 = inlined_call_operand.hbm [shape: f32[8,128], index: 4, kind: output, shape index: {}]
  %s5 = sld [smem:[#allocation0]]
  $region73: #{tpu_custom_call.1} parent=0
    _
  %s7 = ssub.s32 1, %s5
  %s8 = scalar_select 0, %s7, %s5
  $region1: #{tpu_custom_call.1} parent=0
    #allocation3 [shape = 'u8[8192]{0}', space=vmem, size = 0x2000, scoped, tag = 'input window, operand 0']
    #allocation4 [shape = 's32[2]{0}', space=sflag, size = 0x8, scoped, tag = 'scoped memory for tpu_custom_call.1']
    #allocation5 [shape = 's32[2]{0}', space=sflag, size = 0x8, scoped, tag = 'scoped memory for tpu_custom_call.1']
    #allocation6 [shape = 'u8[8192]{0}', space=vmem, size = 0x2000, scoped, tag = 'input window, operand 1']
    #allocation7 [shape = 's32[2]{0}', space=sflag, size = 0x8, scoped, tag = 'scoped memory for tpu_custom_call.1']
    #allocation8 [shape = 'u8[12288]{0}', space=vmem, size = 0x3000, scoped, tag = 'input window, operand 2, single buffered']
    #allocation9 [shape = 'u8[65536]{0}', space=vmem, size = 0x10000, scoped, tag = 'input window, operand 3, single buffered']
    #allocation10 [shape = 's32[1]{0}', space=sflag, size = 0x4, scoped, tag = 'scoped memory for tpu_custom_call.1']
    #allocation11 [shape = 'u8[4096]{0}', space=vmem, size = 0x1000, scoped, tag = 'output window, operand 0, single buffered']
    %9 = vsyncpa [#allocation4], 0
    %s10 = scalar_lea.sflag [#allocation4], 1
    %11 = vsyncpa %s10, 0
    %12 = vsyncpa [#allocation7], 0
    %s13 = scalar_lea.sflag [#allocation7], 1
    %14 = vsyncpa %s13, 0
    %15 = vsyncpa [#allocation10], 0
    %16 = vsyncpa [#allocation5], 0
    loop: start=0, step=1, limit=4
    $region2: #{tpu_custom_call.1} parent=1 // loop_pre_header
      _
    $region3: #{tpu_custom_call.1} parent=1 // loop_header
      %s18 = sphi 0, %s22
      %p19 = scmp.ge.s32.totalorder %s18, 4
      %s28 = sphi 0, %s30
      %s31 = sphi 0, %s28
      %s32 = sphi 0, %s31
      %s48 = sphi 0, %s32
      %s54 = sphi 0, %s56
      %s57 = sphi 0, %s54
      %s58 = sphi 0, %s57
      %s74 = sphi 0, %s58
      %s78 = sphi 0, %s78
      %s80 = sphi 0, %s78
      %s81 = sphi 0, %s80
      %s95 = sphi 0, %s81
      %s99 = sphi 0, %s99
      %s101 = sphi 0, %s99
      %s102 = sphi 0, %s101
      %s116 = sphi 0, %s102
      %s120 = sphi 0, %s120
      %s122 = sphi 0, %s120
      %s123 = sphi 0, %s122
      %s137 = sphi 0, %s123
    $region4: #{tpu_custom_call.1} parent=1 // loop_header_branch
      %21 = sbr.rel (%p19) target = $region8
    $region5: #{tpu_custom_call.1} parent=1 // loop_body
      %s23 = ssub.s32 %s18, 1
      %s24 = ssub.s32 %s18, 2
      %s25 = sadd.s32 %s18, 1
      %s26 = ssub.s32 %s18, %s25
      %p27 = scmp.eq.s32.totalorder %s26, 0
      %s29 = sadd.s32 %s28, 1
      %s30 = scalar_select %p27, %s28, %s29
      %p33 = pneg %p27
      %p34 = scmp.eq.s32.totalorder %s18, 1
      %p35 = por %p33, %p34
      %p36 = scmp.ne.s32.totalorder %s28, %s31
      %p37 = scmp.eq.s32.totalorder %s18, 0
      %p38 = por %p36, %p37
      %p39 = scmp.ne.s32.totalorder %s28, %s31
      %p40 = scmp.eq.s32.totalorder %s23, 1
      %p41 = por %p39, %p40
      %p42 = scmp.ne.s32.totalorder %s31, %s32
      %p43 = scmp.eq.s32.totalorder %s23, 0
      %p44 = por %p42, %p43
      %p45 = scmp.ne.s32.totalorder %s31, %s32
      %p46 = scmp.eq.s32.totalorder %s24, 1
      %p47 = por %p45, %p46
      %p49 = scmp.ne.s32.totalorder %s32, %s48
      %p50 = scmp.eq.s32.totalorder %s24, 0
      %p51 = por %p49, %p50
      %s52 = ssub.s32 %s18, %s25
      %p53 = scmp.eq.s32.totalorder %s52, 0
      %s55 = sadd.s32 %s54, 1
      %s56 = scalar_select %p53, %s54, %s55
      %p59 = pneg %p53
      %p60 = scmp.eq.s32.totalorder %s18, 1
      %p61 = por %p59, %p60
      %p62 = scmp.ne.s32.totalorder %s54, %s57
      %p63 = scmp.eq.s32.totalorder %s18, 0
      %p64 = por %p62, %p63
      %p65 = scmp.ne.s32.totalorder %s54, %s57
      %p66 = scmp.eq.s32.totalorder %s23, 1
      %p67 = por %p65, %p66
      %p68 = scmp.ne.s32.totalorder %s57, %s58
      %p69 = scmp.eq.s32.totalorder %s23, 0
      %p70 = por %p68, %p69
      %p71 = scmp.ne.s32.totalorder %s57, %s58
      %p72 = scmp.eq.s32.totalorder %s24, 1
      %p73 = por %p71, %p72
      %p75 = scmp.ne.s32.totalorder %s58, %s74
      %p76 = scmp.eq.s32.totalorder %s24, 0
      %p77 = por %p75, %p76
      %s79 = sadd.s32 %s78, 1
      %p82 = scmp.eq.s32.totalorder %s18, 1
      %p83 = scmp.ne.s32.totalorder %s78, %s80
      %p84 = scmp.eq.s32.totalorder %s18, 0
      %p85 = por %p83, %p84
      %p86 = scmp.ne.s32.totalorder %s78, %s80
      %p87 = scmp.eq.s32.totalorder %s23, 1
      %p88 = por %p86, %p87
      %p89 = scmp.ne.s32.totalorder %s80, %s81
      %p90 = scmp.eq.s32.totalorder %s23, 0
      %p91 = por %p89, %p90
      %p92 = scmp.ne.s32.totalorder %s80, %s81
      %p93 = scmp.eq.s32.totalorder %s24, 1
      %p94 = por %p92, %p93
      %p96 = scmp.ne.s32.totalorder %s81, %s95
      %p97 = scmp.eq.s32.totalorder %s24, 0
      %p98 = por %p96, %p97
      %s100 = sadd.s32 %s99, 1
      %p103 = scmp.eq.s32.totalorder %s18, 1
      %p104 = scmp.ne.s32.totalorder %s99, %s101
      %p105 = scmp.eq.s32.totalorder %s18, 0
      %p106 = por %p104, %p105
      %p107 = scmp.ne.s32.totalorder %s99, %s101
      %p108 = scmp.eq.s32.totalorder %s23, 1
      %p109 = por %p107, %p108
      %p110 = scmp.ne.s32.totalorder %s101, %s102
      %p111 = scmp.eq.s32.totalorder %s23, 0
      %p112 = por %p110, %p111
      %p113 = scmp.ne.s32.totalorder %s101, %s102
      %p114 = scmp.eq.s32.totalorder %s24, 1
      %p115 = por %p113, %p114
      %p117 = scmp.ne.s32.totalorder %s102, %s116
      %p118 = scmp.eq.s32.totalorder %s24, 0
      %p119 = por %p117, %p118
      %s121 = sadd.s32 %s120, 1
      %p124 = scmp.eq.s32.totalorder %s18, 1
      %p125 = scmp.ne.s32.totalorder %s120, %s122
      %p126 = scmp.eq.s32.totalorder %s18, 0
      %p127 = por %p125, %p126
      %p128 = scmp.ne.s32.totalorder %s120, %s122
      %p129 = scmp.eq.s32.totalorder %s23, 1
      %p130 = por %p128, %p129
      %p131 = scmp.ne.s32.totalorder %s122, %s123
      %p132 = scmp.eq.s32.totalorder %s23, 0
      %p133 = por %p131, %p132
      %p134 = scmp.ne.s32.totalorder %s122, %s123
      %p135 = scmp.eq.s32.totalorder %s24, 1
      %p136 = por %p134, %p135
      %p138 = scmp.ne.s32.totalorder %s123, %s137
      %p139 = scmp.eq.s32.totalorder %s24, 0
      %p140 = por %p138, %p139
      %p141 = scmp.le.s32.totalorder 1, %s18
      %p142 = scmp.lt.s32.totalorder %s18, 3
      %p143 = pnand %p141, %p142
      %p144 = pneg %p143
      // Predicated region
      $region9: #{tpu_custom_call.1} parent=5 // pred_check
        _
      $region10: #{tpu_custom_call.1} parent=5 // pred_check_branch
        %146 = sbr.rel (%p143) target = $region12
      $region11: #{tpu_custom_call.1} parent=5 // pred_region
        %s147 = ssub.s32 %s18, 1
        // Predicated region
        $region13: #{tpu_custom_call.1} parent=11 // pred_check
          %p148 = pneg %p91
        $region14: #{tpu_custom_call.1} parent=11 // pred_check_branch
          %150 = sbr.rel (%p148) target = $region16
        $region15: #{tpu_custom_call.1} parent=11 // pred_region
          %s152 = ssub.s32 384, 384
          %153 = vsyncadd [#allocation7], %s152
          %s154 = sshll.u32 [#allocation8], 4
          %s155 = int_to_ptr.vmem [resolvable:$true] %s154
          %160 = dma.hbm_to_vmem [thread:$0]  %s2, 384, %s155, [#allocation7], 128, 128, 8
        $region16: #{tpu_custom_call.1} parent=11 // pred_fallthru
          _
        // Predicated region
        $region17: #{tpu_custom_call.1} parent=11 // pred_check
          %p161 = pneg %p112
        $region18: #{tpu_custom_call.1} parent=11 // pred_check_branch
          %163 = sbr.rel (%p161) target = $region20
        $region19: #{tpu_custom_call.1} parent=11 // pred_region
          %s165 = ssub.s32 2048, 2048
          %166 = vsyncadd [#allocation10], %s165
          %s167 = sshll.u32 [#allocation9], 4
          %s168 = int_to_ptr.vmem [resolvable:$true] %s167
          %173 = dma.hbm_to_vmem [thread:$0]  %s3, 2048, %s168, [#allocation10], 128, 128, 8
        $region20: #{tpu_custom_call.1} parent=11 // pred_fallthru
          _
      $region12: #{tpu_custom_call.1} parent=5 // pred_fallthru
        _
      %p174 = scmp.lt.s32.totalorder %s18, 2
      // Predicated region
      $region21: #{tpu_custom_call.1} parent=5 // pred_check
        %p175 = pneg %p174
      $region22: #{tpu_custom_call.1} parent=5 // pred_check_branch
        %177 = sbr.rel (%p175) target = $region24
      $region23: #{tpu_custom_call.1} parent=5 // pred_region
        // Predicated region
        $region25: #{tpu_custom_call.1} parent=23 // pred_check
          %p178 = pneg %p38
        $region26: #{tpu_custom_call.1} parent=23 // pred_check_branch
          %180 = sbr.rel (%p178) target = $region28
        $region27: #{tpu_custom_call.1} parent=23 // pred_region
          %s181 = sand.u32 %s28, 1
          %s182 = scalar_lea.sflag [#allocation4], %s181
          %s183 = sand.u32 %s28, 1
          %s184 = smul.addr %s183, 8
          %s185 = scalar_lea.vmem [#allocation3], %s184
          %s187 = ssub.s32 128, 128
          %188 = vsyncadd %s182, %s187
          %s189 = smul.addr %s18, 128
          %s190 = scalar_lea.hbm %s0, %s189
          %s192 = sshll.u32 %s185, 4
          %s193 = int_to_ptr.vmem [resolvable:$true] %s192
          %195 = dma.hbm_to_vmem [thread:$0]  %s190, 128, %s193, %s182
        $region28: #{tpu_custom_call.1} parent=23 // pred_fallthru
          _
        // Predicated region
        $region29: #{tpu_custom_call.1} parent=23 // pred_check
          %p196 = pneg %p64
        $region30: #{tpu_custom_call.1} parent=23 // pred_check_branch
          %198 = sbr.rel (%p196) target = $region32
        $region31: #{tpu_custom_call.1} parent=23 // pred_region
          %s199 = sand.u32 %s18, 1
          %s200 = scalar_lea.sflag [#allocation7], %s199
          %s201 = sand.u32 %s54, 1
          %s202 = smul.addr %s201, 8
          %s203 = scalar_lea.vmem [#allocation6], %s202
          %s205 = ssub.s32 128, 128
          %206 = vsyncadd %s200, %s205
          %s207 = smul.addr %s18, 128
          %s208 = scalar_lea.hbm %s1, %s207
          %s210 = sshll.u32 %s203, 4
          %s211 = int_to_ptr.vmem [resolvable:$true] %s210
          %213 = dma.hbm_to_vmem [thread:$0]  %s208, 128, %s211, %s200
        $region32: #{tpu_custom_call.1} parent=23 // pred_fallthru
          _
      $region24: #{tpu_custom_call.1} parent=5 // pred_fallthru
        _
      %p214 = scmp.le.s32.totalorder 1, %s18
      %p215 = scmp.lt.s32.totalorder %s18, 3
      %p216 = pnand %p214, %p215
      %p217 = pneg %p216
      // Predicated region
      $region33: #{tpu_custom_call.1} parent=5 // pred_check
        _
      $region34: #{tpu_custom_call.1} parent=5 // pred_check_branch
        %219 = sbr.rel (%p216) target = $region36
      $region35: #{tpu_custom_call.1} parent=5 // pred_region
        %s220 = ssub.s32 %s18, 1
        %s221 = sand.u32 %s31, 1
        %s222 = scalar_lea.sflag [#allocation4], %s221
        %s223 = sand.u32 %s31, 1
        %s224 = smul.addr %s223, 8
        %s225 = scalar_lea.vmem [#allocation3], %s224
        // Predicated region
        $region37: #{tpu_custom_call.1} parent=35 // pred_check
          %p226 = pneg %p44
        $region38: #{tpu_custom_call.1} parent=35 // pred_check_branch
          %228 = sbr.rel (%p226) target = $region40
        $region39: #{tpu_custom_call.1} parent=35 // pred_region
          %229 = dma.done %s222, 128
        $region40: #{tpu_custom_call.1} parent=35 // pred_fallthru
          _
        %s230 = sand.u32 %s23, 1
        %s231 = scalar_lea.sflag [#allocation7], %s230
        %s232 = sand.u32 %s57, 1
        %s233 = smul.addr %s232, 8
        %s234 = scalar_lea.vmem [#allocation6], %s233
        // Predicated region
        $region41: #{tpu_custom_call.1} parent=35 // pred_check
          %p235 = pneg %p70
        $region42: #{tpu_custom_call.1} parent=35 // pred_check_branch
          %237 = sbr.rel (%p235) target = $region44
        $region43: #{tpu_custom_call.1} parent=35 // pred_region
          %238 = dma.done %s231, 128
        $region44: #{tpu_custom_call.1} parent=35 // pred_fallthru
          _
        // Predicated region
        $region45: #{tpu_custom_call.1} parent=35 // pred_check
          %p239 = pneg %p91
        $region46: #{tpu_custom_call.1} parent=35 // pred_check_branch
          %241 = sbr.rel (%p239) target = $region48
        $region47: #{tpu_custom_call.1} parent=35 // pred_region
          %242 = dma.done [#allocation7], 384
        $region48: #{tpu_custom_call.1} parent=35 // pred_fallthru
          _
        // Predicated region
        $region49: #{tpu_custom_call.1} parent=35 // pred_check
          %p243 = pneg %p112
        $region50: #{tpu_custom_call.1} parent=35 // pred_check_branch
          %245 = sbr.rel (%p243) target = $region52
        $region51: #{tpu_custom_call.1} parent=35 // pred_region
          %246 = dma.done [#allocation10], 2048
        $region52: #{tpu_custom_call.1} parent=35 // pred_fallthru
          _
        %s247 = sand.u32 %s31, 1
        %s248 = scalar_lea.sflag [#allocation4], %s247
        %s249 = sand.u32 %s31, 1
        %s250 = smul.addr %s249, 8
        %s251 = scalar_lea.vmem [#allocation3], %s250
        %p252 = pneg %p44
        %p253 = pneg %p41
        %s254 = sand.u32 %s23, 1
        %s255 = scalar_lea.sflag [#allocation7], %s254
        %s256 = sand.u32 %s57, 1
        %s257 = smul.addr %s256, 8
        %s258 = scalar_lea.vmem [#allocation6], %s257
        %p259 = pneg %p70
        %p260 = pneg %p67
        %p261 = pneg %p91
        %p262 = pneg %p88
        %p263 = pneg %p112
        %p264 = pneg %p109
        %p265 = pneg %p133
        %p266 = pneg %p130
        %p267 = scmp.eq.s32.totalorder %s23, 0
        // Predicated region
        $region53: #{tpu_custom_call.1} parent=35 // pred_check
          %p268 = pneg %p267
        $region54: #{tpu_custom_call.1} parent=35 // pred_check_branch
          %270 = sbr.rel (%p268) target = $region56
        $region55: #{tpu_custom_call.1} parent=35 // pred_region
          %271 = vst [vmem:[#allocation2] sm:$0xff] 0.0
          %272 = vst [vmem:[#allocation11] sm:$0xff] 0.0
        $region56: #{tpu_custom_call.1} parent=35 // pred_fallthru
          _
        %v273 = vld [vmem:[%s225] sm:$0xff]
        %v274 = vld [vmem:[%s234] sm:$0xff]
        %v275 = vlog2.pop %v274
        %v276 = vmul.f32 %v275, 0.6931472
        %v277 = vmax.f32 %v276, -100.0
        %v278 = vsub.f32 1.0, %v274
        %v279 = vlog2.pop %v278
        %v280 = vmul.f32 %v279, 0.6931472
        %v281 = vmax.f32 %v280, -100.0
        %v282 = vmul.f32 %v273, %v277
        %v283 = vsub.f32 1.0, %v273
        %v284 = vmul.f32 %v283, %v281
        %v285 = vadd.f32 %v282, %v284
        %v286 = vsub.f32 0.0, %v285
        %v287 = vld [vmem:[#allocation2] sm:$0xff]
        %v288 = vadd.f32 %v286, 0.0
        %v289 = vadd.f32 %v287, %v288
        %290 = vst [vmem:[#allocation2] sm:$0xff] %v289
        %p291 = scmp.eq.s32.totalorder %s23, 1
        // Predicated region
        $region57: #{tpu_custom_call.1} parent=35 // pred_check
          %p292 = pneg %p291
        $region58: #{tpu_custom_call.1} parent=35 // pred_check_branch
          %294 = sbr.rel (%p292) target = $region60
        $region59: #{tpu_custom_call.1} parent=35 // pred_region
          %v295 = vld [vmem:[#allocation2] sm:$0xff]
          %296 = vadd.xlane.f32.xlu0 %v295
          %v297 = vpop.xlane.xlu0 %296
          %v298 = vrot.slane %v297, 4
          %v299 = vadd.f32 %v297, %v298
          %v300 = vrot.slane %v299, 2
          %v301 = vadd.f32 %v299, %v300
          %v302 = vrot.slane %v301, 1
          %v303 = vadd.f32 %v301, %v302
          %s304 = vtos %v303
          %v305 = vrcp.pop 2048.0
          %s306 = vtos %v305
          %s307 = smul.f32 %s304, %s306
          %v308 = vld [vmem:[#allocation8] sm:$0xff]
          %v309 = vld [vmem:[#allocation8 + $0x8] sm:$0xff]
          %v310 = vld [vmem:[#allocation8 + $0x10] sm:$0xff]
          %v311 = vadd.f32 %v309, 1.0
          %v312 = vmul.f32 %v308, %v308
          %v313 = vsub.f32 %v311, %v312
          %v314 = vmul.f32 %v309, 1.442695
          %v315 = vpow.pop %v314
          %v316 = vsub.f32 %v313, %v315
          %317 = vadd.xlane.f32.xlu0 %v316
          %v318 = vpop.xlane.xlu0 %317
          %v319 = vrot.slane %v318, 4
          %v320 = vadd.f32 %v318, %v319
          %v321 = vrot.slane %v320, 2
          %v322 = vadd.f32 %v320, %v321
          %v323 = vrot.slane %v322, 1
          %v324 = vadd.f32 %v322, %v323
          %s325 = vtos %v324
          %s326 = smul.f32 %s325, -0.5
          %v327 = vrcp.pop 4.0
          %s328 = vtos %v327
          %s329 = smul.f32 %s326, %s328
          %v330 = vld [vmem:[#allocation9] sm:$0xff]
          %v331 = vld [vmem:[#allocation9 + $0x8] sm:$0xff]
          %v332 = vld [vmem:[#allocation9 + $0x10] sm:$0xff]
          %v333 = vld [vmem:[#allocation9 + $0x18] sm:$0xff]
          %v334 = vld [vmem:[#allocation9 + $0x20] sm:$0xff]
          %v335 = vld [vmem:[#allocation9 + $0x28] sm:$0xff]
          %v336 = vld [vmem:[#allocation9 + $0x30] sm:$0xff]
          %v337 = vld [vmem:[#allocation9 + $0x38] sm:$0xff]
          %v338 = vld [vmem:[#allocation9 + $0x40] sm:$0xff]
          %v339 = vld [vmem:[#allocation9 + $0x48] sm:$0xff]
          %v340 = vld [vmem:[#allocation9 + $0x50] sm:$0xff]
          %v341 = vld [vmem:[#allocation9 + $0x58] sm:$0xff]
          %v342 = vld [vmem:[#allocation9 + $0x60] sm:$0xff]
          %v343 = vld [vmem:[#allocation9 + $0x68] sm:$0xff]
          %v344 = vld [vmem:[#allocation9 + $0x70] sm:$0xff]
          %v345 = vld [vmem:[#allocation9 + $0x78] sm:$0xff]
          %346 = vmatprep.subr.mxu0 0.0
          %347 = vmatpush1.msra.mxu0 %v330
          %348 = vmatprep.subr.mxu0 0.0
          %349 = vmatpush1.msra.mxu0 %v331
          %350 = vmatprep.subr.mxu0 0.0
          %351 = vmatpush1.msra.mxu0 %v332
          %352 = vmatprep.subr.mxu0 0.0
          %353 = vmatpush1.msra.mxu0 %v333
          %354 = vmatprep.subr.mxu0 0.0
          %355 = vmatpush1.msra.mxu0 %v334
          %356 = vmatprep.subr.mxu0 0.0
          %357 = vmatpush1.msra.mxu0 %v335
          %358 = vmatprep.subr.mxu0 0.0
          %359 = vmatpush1.msra.mxu0 %v336
          %360 = vmatprep.subr.mxu0 0.0
          %361 = vmatpush1.msra.mxu0 %v337
          %362 = vmatprep.subr.mxu0 0.0
          %363 = vmatpush1.msra.mxu0 %v338
          %364 = vmatprep.subr.mxu0 0.0
          %365 = vmatpush1.msra.mxu0 %v339
          %366 = vmatprep.subr.mxu0 0.0
          %367 = vmatpush1.msra.mxu0 %v340
          %368 = vmatprep.subr.mxu0 0.0
          %369 = vmatpush1.msra.mxu0 %v341
          %370 = vmatprep.subr.mxu0 0.0
          %371 = vmatpush1.msra.mxu0 %v342
          %372 = vmatprep.subr.mxu0 0.0
          %373 = vmatpush1.msra.mxu0 %v343
          %374 = vmatprep.subr.mxu0 0.0
          %375 = vmatpush1.msra.mxu0 %v344
          %376 = vmatprep.subr.mxu0 0.0
          %377 = vmatpush1.msra.mxu0 %v345
          %378 = vmatprep.subr.mxu0 0.0
          %379 = vmatpush1.msra.mxu0 0.0
          %380 = vmatprep.subr.mxu0 0.0
          %381 = vmatpush1.msra.mxu0 0.0
          %382 = vmatprep.subr.mxu0 0.0
          %383 = vmatpush1.msra.mxu0 0.0
          %384 = vmatprep.subr.mxu0 0.0
          %385 = vmatpush1.msra.mxu0 0.0
          %386 = vmatprep.subr.mxu0 0.0
          %387 = vmatpush1.msra.mxu0 0.0
          %388 = vmatprep.subr.mxu0 0.0
          %389 = vmatpush1.msra.mxu0 0.0
          %390 = vmatprep.subr.mxu0 0.0
          %391 = vmatpush1.msra.mxu0 0.0
          %392 = vmatprep.subr.mxu0 0.0
          %393 = vmatpush1.msra.mxu0 0.0
          %394 = vmatprep.subr.mxu0 0.0
          %395 = vmatpush1.msra.mxu0 0.0
          %396 = vmatprep.subr.mxu0 0.0
          %397 = vmatpush1.msra.mxu0 0.0
          %398 = vmatprep.subr.mxu0 0.0
          %399 = vmatpush1.msra.mxu0 0.0
          %400 = vmatprep.subr.mxu0 0.0
          %401 = vmatpush1.msra.mxu0 0.0
          %402 = vmatprep.subr.mxu0 0.0
          %403 = vmatpush1.msra.mxu0 0.0
          %404 = vmatprep.subr.mxu0 0.0
          %405 = vmatpush1.msra.mxu0 0.0
          %406 = vmatprep.subr.mxu0 0.0
          %407 = vmatpush1.msra.mxu0 0.0
          %408 = vmatprep.subr.mxu0 0.0
          %409 = vmatpush1.msra.mxu0 0.0
          %410 = vmatprep.mubr.f32.mxu0 0.0
          %411 = vmatmul.mubr.f32.gmra.mrb[0].mxu0 %v310
          %v412 = vpop.f32.mrb[0].mxu0
          %v413 = vadd.f32 0.0, %v412
          %v414 = vpop.f32.mrb[0].mxu0
          %415 = vdwg.mxu0
          %v417 = vrot.slane %v310, 1
          %v419 = vsub.f32 %v310, %v417
          %v420 = vrot.slane %v310, 2
          %v422 = vsub.f32 %v310, %v420
          %v424 = vrot.slane %v413, 1
          %v426 = vsub.f32 %v413, %v424
          %v427 = vrot.slane %v310, 3
          %v429 = vadd.f32 %v426, %v427
          %v430 = vmul.f32 %v419, %v429
          %vm431 = vcmask 1040384
          %v432 = vsel %vm431, %v430, 0.0
          %433 = vadd.xlane.f32.xlu0 %v432
          %v434 = vpop.xlane.xlu0 %433
          %v435 = vrot.slane %v434, 4
          %v436 = vadd.f32 %v434, %v435
          %v437 = vrot.slane %v436, 2
          %v438 = vadd.f32 %v436, %v437
          %v439 = vrot.slane %v438, 1
          %v440 = vadd.f32 %v438, %v439
          %s441 = vtos %v440
          %v442 = vrot.slane %v413, 2
          %v444 = vsub.f32 %v413, %v442
          %v445 = vadd.f32 %v444, %v427
          %v446 = vmul.f32 %v422, %v445
          %v447 = vsel %vm431, %v446, 0.0
          %448 = vadd.xlane.f32.xlu0 %v447
          %v449 = vpop.xlane.xlu0 %448
          %v450 = vrot.slane %v449, 4
          %v451 = vadd.f32 %v449, %v450
          %v452 = vrot.slane %v451, 2
          %v453 = vadd.f32 %v451, %v452
          %v454 = vrot.slane %v453, 1
          %v455 = vadd.f32 %v453, %v454
          %s456 = vtos %v455
          %s457 = ssub.f32 %s441, %s456
          %s458 = sadd.f32 %s457, 1.0
          %s459 = smax.f32 %s458, 0.0
          %s460 = sadd.f32 %s307, %s329
          %s461 = sadd.f32 %s460, %s459
          %v462 = vstv %s461
          %463 = vst [vmem:[#allocation11] sm:$0x1] %v462
          %v464 = vstv %s459
          %465 = vst [vmem:[#allocation11 + $0x1] sm:$0x1] %v464
          %v466 = vstv %s307
          %467 = vst [vmem:[#allocation11 + $0x2] sm:$0x1] %v466
          %v468 = vstv %s329
          %469 = vst [vmem:[#allocation11 + $0x3] sm:$0x1] %v468
        $region60: #{tpu_custom_call.1} parent=35 // pred_fallthru
          _
        // Predicated region
        $region61: #{tpu_custom_call.1} parent=35 // pred_check
          %p470 = pneg %p130
        $region62: #{tpu_custom_call.1} parent=35 // pred_check_branch
          %472 = sbr.rel (%p470) target = $region64
        $region63: #{tpu_custom_call.1} parent=35 // pred_region
          %s474 = ssub.s32 128, 128
          %475 = vsyncadd [#allocation5], %s474
          %s477 = sshll.u32 [#allocation11], 4
          %s478 = int_to_ptr.vmem [resolvable:$true] %s477
          %480 = dma.vmem_to_hbm [thread:$0]  %s478, 128, %s4, [#allocation5]
        $region64: #{tpu_custom_call.1} parent=35 // pred_fallthru
          _
        // Predicated region
        $region65: #{tpu_custom_call.1} parent=35 // pred_check
          %p481 = pneg %p130
        $region66: #{tpu_custom_call.1} parent=35 // pred_check_branch
          %483 = sbr.rel (%p481) target = $region68
        $region67: #{tpu_custom_call.1} parent=35 // pred_region
          %484 = dma.done [#allocation5], 128
        $region68: #{tpu_custom_call.1} parent=35 // pred_fallthru
          _
      $region36: #{tpu_custom_call.1} parent=5 // pred_fallthru
        _
      %p485 = scmp.le.s32.totalorder 2, %s18
      // Predicated region
      $region69: #{tpu_custom_call.1} parent=5 // pred_check
        %p486 = pneg %p485
      $region70: #{tpu_custom_call.1} parent=5 // pred_check_branch
        %488 = sbr.rel (%p486) target = $region72
      $region71: #{tpu_custom_call.1} parent=5 // pred_region
        %s489 = ssub.s32 %s18, 2
      $region72: #{tpu_custom_call.1} parent=5 // pred_fallthru
        _
    $region6: #{tpu_custom_call.1} parent=1 // loop_footer
      %s22 = sadd.s32 1, %s18
    $region7: #{tpu_custom_call.1} parent=1 // loop_footer_branch
      %17 = sbr.rel target = $region3
    $region8: #{tpu_custom_call.1} parent=1 // loop_exit
      _
    %490 = vsyncpa [#allocation4], 1
    %s491 = scalar_lea.sflag [#allocation4], 1
    %492 = vsyncpa %s491, 1
    %493 = vsyncpa [#allocation7], 1
    %s494 = scalar_lea.sflag [#allocation7], 1
    %495 = vsyncpa %s494, 1
    %496 = vsyncpa [#allocation10], 1
    %497 = vsyncpa [#allocation5], 1
    %s498 = scalar_lea.sflag [#allocation5], 1
    %499 = vsyncpa %s498, 1

</llo_original>
